<compile_context>
chip_gen: v7x
topology: tpu7x:2x2x1
jax: 0.10.0
libtpu: 0.0.40
codegen_flags: <defaults>
</compile_context>

<pallas_src>
import jax
import jax.numpy as jnp
from jax.experimental import pallas as pl
from jax.experimental.pallas import tpu as pltpu

_LANE = 128


def _mlp_kernel(xT_ref, w1T_ref, b1_ref, w2T_ref, b2_ref, w3T_ref, b3_ref, o_ref):
    xT = xT_ref[...]                     # (in, TB)  batch on the 128-lane axis
    w1T = w1T_ref[...]                   # (H, in)

    # Layer 1: K = in (==2) contraction as VPU broadcast-FMAs (kept off the MXU).
    # xT[k:k+1, :] is a lane-dense row (stride-0 sublane broadcast); the (H, 1)
    # weight-column lane-broadcasts are weight-only.
    h1 = b1_ref[...]                     # (H, 1) -> broadcasts to (H, TB)
    for k in range(xT.shape[0]):         # static tiny unroll (in == 2)
        h1 = h1 + w1T[:, k:k + 1] * xT[k:k + 1, :]
    h1 = jnp.maximum(h1, 0.0)

    # Layer 2: 64x64 MXU matmul with f32 accumulation, lane-dense result.
    h2 = jnp.dot(w2T_ref[...], h1, preferred_element_type=jnp.float32) + b2_ref[...]
    h2 = jnp.maximum(h2, 0.0)

    # Layer 3: (3, 64) @ (64, TB) Q head -> lane-dense (3, TB) store.
    # TODO(synk): if the consumer is act()'s argmax or a TD-loss gather, fuse
    # that reduction here and emit a (1, TB) result instead of (3, TB).
    q = jnp.dot(w3T_ref[...], h2, preferred_element_type=jnp.float32) + b3_ref[...]
    o_ref[...] = q.astype(o_ref.dtype)


def _round_up(n, m):
    return ((n + m - 1) // m) * m


def agent_dqn_forward(x, params, block_batch=4096):
    """Agent_DQN MLP forward pass as a lane-dense, batch-tiled Pallas kernel.

    x: (batch, input_size) float32
    params: dict with w1 (in,H), b1 (1,H), w2 (H,H), b2 (1,H), w3 (H,3), b3 (1,3)
    returns: (batch, 3) float32 Q-values
    """
    batch, in_dim = x.shape
    hidden = params["w2"].shape[0]
    out_dim = params["w3"].shape[1]

    # Batch lives on the lane axis -> tile must be a multiple of 128.
    min_padded = _round_up(batch, _LANE)
    tb = min(_round_up(block_batch, _LANE), min_padded)
    # Keep >= 2 grid steps when the batch is big enough so the "parallel" axis
    # can actually shard across v7x's two TensorCores (no-op on v5e/v6e).
    if min_padded // tb < 2 and min_padded >= 2 * _LANE:
        tb = _round_up(min_padded // 2, _LANE)
    padded = _round_up(batch, tb)
    grid = (padded // tb,)

    # Transposed, lane-padded input: copies only in_dim(=2) x B floats, far
    # cheaper than a full batch-major pad of a big replay/eval batch.
    xT = jnp.pad(x.T, ((0, 0), (0, padded - batch)))

    def const(i):  # weights / biases: same block every step -> VMEM-resident
        return (0, 0)

    flops = 2 * padded * (in_dim * hidden + hidden * hidden + hidden * out_dim)
    bytes_accessed = 4 * (
        padded * (in_dim + out_dim)
        + in_dim * hidden + hidden * hidden + hidden * out_dim
        + 2 * hidden + out_dim
    )

    qT = pl.pallas_call(
        _mlp_kernel,
        out_shape=jax.ShapeDtypeStruct((out_dim, padded), jnp.float32),
        grid_spec=pltpu.PrefetchScalarGridSpec(
            num_scalar_prefetch=0,
            grid=grid,
            in_specs=[
                pl.BlockSpec((in_dim, tb), lambda i: (0, i)),   # xT: batch-tiled on lanes
                pl.BlockSpec((hidden, in_dim), const),          # w1^T
                pl.BlockSpec((hidden, 1), const),               # b1^T
                pl.BlockSpec((hidden, hidden), const),          # w2^T
                pl.BlockSpec((hidden, 1), const),               # b2^T
                pl.BlockSpec((out_dim, hidden), const),         # w3^T
                pl.BlockSpec((out_dim, 1), const),              # b3^T
            ],
            out_specs=pl.BlockSpec((out_dim, tb), lambda i: (0, i)),
        ),
        compiler_params=pltpu.CompilerParams(
            dimension_semantics=("parallel",),  # shard batch tiles across TCs on v7x
        ),
        cost_estimate=pl.CostEstimate(
            flops=flops, transcendentals=0, bytes_accessed=bytes_accessed),
    )(xT, params["w1"].T, params["b1"].T, params["w2"].T, params["b2"].T,
      params["w3"].T, params["b3"].T)

    # Back to the PyTorch-facing (batch, 3) layout; padded lanes sliced off.
    return qT[:, :batch].T


def init_params(key, input_size=2, hidden_size=64, out_size=3):
    """Deterministic init mimicking PyTorch nn.Linear defaults:
    uniform(-1/sqrt(fan_in), 1/sqrt(fan_in)) for both weight and bias."""
    ks = jax.random.split(key, 6)

    def linear_init(kw, kb, fan_in, fan_out):
        bound = 1.0 / jnp.sqrt(jnp.float32(fan_in))
        w = jax.random.uniform(kw, (fan_in, fan_out), jnp.float32, -bound, bound)
        b = jax.random.uniform(kb, (1, fan_out), jnp.float32, -bound, bound)
        return w, b

    w1, b1 = linear_init(ks[0], ks[1], input_size, hidden_size)
    w2, b2 = linear_init(ks[2], ks[3], hidden_size, hidden_size)
    w3, b3 = linear_init(ks[4], ks[5], hidden_size, out_size)
    return {"w1": w1, "b1": b1, "w2": w2, "b2": b2, "w3": w3, "b3": b3}


def reference_forward(x, p):
    hi = jax.lax.Precision.HIGHEST
    h1 = jnp.maximum(jnp.dot(x, p["w1"], precision=hi) + p["b1"], 0.0)
    h2 = jnp.maximum(jnp.dot(h1, p["w2"], precision=hi) + p["b2"], 0.0)
    return jnp.dot(h2, p["w3"], precision=hi) + p["b3"]


if __name__ == "__main__":
    key = jax.random.PRNGKey(0)
    k_param, k_x1, k_x2 = jax.random.split(key, 3)

    input_size, hidden_size = 2, 64
    params = init_params(k_param, input_size=input_size, hidden_size=hidden_size)

    # Small act()-style batch (pads 2 -> 128 lanes internally, single grid step).
    x_small = jax.random.normal(k_x1, (2, input_size), jnp.float32)
    q_small = agent_dqn_forward(x_small, params)
    jax.block_until_ready(q_small)
    q_small_ref = reference_forward(x_small, params)
    assert q_small.shape == (2, 3)
    assert jnp.allclose(q_small, q_small_ref, atol=1e-4, rtol=1e-4), "small-batch mismatch"

    # Training-style ragged batch: exercises tail padding and the >=2-grid-step
    # split (two 256-lane tiles) used for v7x megacore sharding.
    x_big = jax.random.normal(k_x2, (300, input_size), jnp.float32)
    q_big = agent_dqn_forward(x_big, params)
    jax.block_until_ready(q_big)
    q_big_ref = reference_forward(x_big, params)
    assert q_big.shape == (300, 3)
    assert jnp.allclose(q_big, q_big_ref, atol=1e-4, rtol=1e-4), "tiled-batch mismatch"

    print("KERNEL_OK")
</pallas_src>

<mosaic_0001>
module attributes {stable_mosaic.version = 11 : i64} {
  func.func @_mlp_kernel(%arg0: i32, %arg1: memref<2x128xf32, #tpu.memory_space<vmem>>, %arg2: memref<64x2xf32, #tpu.memory_space<vmem>>, %arg3: memref<64x1xf32, #tpu.memory_space<vmem>>, %arg4: memref<64x64xf32, #tpu.memory_space<vmem>>, %arg5: memref<64x1xf32, #tpu.memory_space<vmem>>, %arg6: memref<3x64xf32, #tpu.memory_space<vmem>>, %arg7: memref<3x1xf32, #tpu.memory_space<vmem>>, %arg8: memref<3x128xf32, #tpu.memory_space<vmem>>) attributes {dimension_semantics = [#tpu.dimension_semantics<parallel>], iteration_bounds = array<i64: 1>, scalar_prefetch = 0 : i64, scratch_operands = 0 : i64, tpu.core_type = #tpu.core_type<tc>, window_params = [{transform_indices = @transform_0, window_bounds = array<i64: 2, 128>}, {pipeline_mode = #tpu.pipeline_mode<synchronous>, transform_indices = @transform_1, window_bounds = array<i64: 64, 2>}, {pipeline_mode = #tpu.pipeline_mode<synchronous>, transform_indices = @transform_2, window_bounds = array<i64: 64, 1>}, {pipeline_mode = #tpu.pipeline_mode<synchronous>, transform_indices = @transform_3, window_bounds = array<i64: 64, 64>}, {pipeline_mode = #tpu.pipeline_mode<synchronous>, transform_indices = @transform_4, window_bounds = array<i64: 64, 1>}, {pipeline_mode = #tpu.pipeline_mode<synchronous>, transform_indices = @transform_5, window_bounds = array<i64: 3, 64>}, {pipeline_mode = #tpu.pipeline_mode<synchronous>, transform_indices = @transform_6, window_bounds = array<i64: 3, 1>}, {transform_indices = @transform_7, window_bounds = array<i64: 3, 128>}]} {
    %c0 = arith.constant 0 : index
    %c0_0 = arith.constant 0 : index
    %0 = vector.load %arg1[%c0, %c0_0] : memref<2x128xf32, #tpu.memory_space<vmem>>, vector<2x128xf32>
    %c0_1 = arith.constant 0 : index
    %c0_2 = arith.constant 0 : index
    %1 = vector.load %arg2[%c0_1, %c0_2] : memref<64x2xf32, #tpu.memory_space<vmem>>, vector<64x2xf32>
    %c0_3 = arith.constant 0 : index
    %c0_4 = arith.constant 0 : index
    %2 = vector.load %arg3[%c0_3, %c0_4] : memref<64x1xf32, #tpu.memory_space<vmem>>, vector<64x1xf32>
    %3 = vector.extract_strided_slice %1 {offsets = [0, 0], sizes = [64, 1], strides = [1, 1]} : vector<64x2xf32> to vector<64x1xf32>
    %4 = vector.extract_strided_slice %0 {offsets = [0, 0], sizes = [1, 128], strides = [1, 1]} : vector<2x128xf32> to vector<1x128xf32>
    %5 = vector.broadcast %3 : vector<64x1xf32> to vector<64x128xf32>
    %6 = vector.broadcast %4 : vector<1x128xf32> to vector<64x128xf32>
    %7 = arith.mulf %5, %6 : vector<64x128xf32>
    %8 = vector.broadcast %2 : vector<64x1xf32> to vector<64x128xf32>
    %9 = arith.addf %8, %7 : vector<64x128xf32>
    %10 = vector.extract_strided_slice %1 {offsets = [0, 1], sizes = [64, 1], strides = [1, 1]} : vector<64x2xf32> to vector<64x1xf32>
    %11 = vector.extract_strided_slice %0 {offsets = [1, 0], sizes = [1, 128], strides = [1, 1]} : vector<2x128xf32> to vector<1x128xf32>
    %12 = vector.broadcast %10 : vector<64x1xf32> to vector<64x128xf32>
    %13 = vector.broadcast %11 : vector<1x128xf32> to vector<64x128xf32>
    %14 = arith.mulf %12, %13 : vector<64x128xf32>
    %15 = arith.addf %9, %14 : vector<64x128xf32>
    %cst = arith.constant 0.000000e+00 : f32
    %16 = vector.broadcast %cst : f32 to vector<64x128xf32>
    %17 = arith.maximumf %15, %16 : vector<64x128xf32>
    %c0_5 = arith.constant 0 : index
    %c0_6 = arith.constant 0 : index
    %18 = vector.load %arg4[%c0_5, %c0_6] : memref<64x64xf32, #tpu.memory_space<vmem>>, vector<64x64xf32>
    %cst_7 = arith.constant dense<0.000000e+00> : vector<64x128xf32>
    %19 = tpu.matmul %18, %17, %cst_7 {dimension_numbers = #tpu.dot_dimension_numbers<[1], [0], [0], [1], [0, 0, 1, 1], [], []>} : vector<64x64xf32>, vector<64x128xf32>, vector<64x128xf32> -> vector<64x128xf32>
    %c0_8 = arith.constant 0 : index
    %c0_9 = arith.constant 0 : index
    %20 = vector.load %arg5[%c0_8, %c0_9] : memref<64x1xf32, #tpu.memory_space<vmem>>, vector<64x1xf32>
    %21 = vector.broadcast %20 : vector<64x1xf32> to vector<64x128xf32>
    %22 = arith.addf %19, %21 : vector<64x128xf32>
    %cst_10 = arith.constant 0.000000e+00 : f32
    %23 = vector.broadcast %cst_10 : f32 to vector<64x128xf32>
    %24 = arith.maximumf %22, %23 : vector<64x128xf32>
    %c0_11 = arith.constant 0 : index
    %c0_12 = arith.constant 0 : index
    %25 = vector.load %arg6[%c0_11, %c0_12] : memref<3x64xf32, #tpu.memory_space<vmem>>, vector<3x64xf32>
    %cst_13 = arith.constant dense<0.000000e+00> : vector<3x128xf32>
    %26 = tpu.matmul %25, %24, %cst_13 {dimension_numbers = #tpu.dot_dimension_numbers<[1], [0], [0], [1], [0, 0, 1, 1], [], []>} : vector<3x64xf32>, vector<64x128xf32>, vector<3x128xf32> -> vector<3x128xf32>
    %c0_14 = arith.constant 0 : index
    %c0_15 = arith.constant 0 : index
    %27 = vector.load %arg7[%c0_14, %c0_15] : memref<3x1xf32, #tpu.memory_space<vmem>>, vector<3x1xf32>
    %28 = vector.broadcast %27 : vector<3x1xf32> to vector<3x128xf32>
    %29 = arith.addf %26, %28 : vector<3x128xf32>
    %c0_16 = arith.constant 0 : index
    %c0_17 = arith.constant 0 : index
    %30 = vector.load %arg8[%c0_16, %c0_17] : memref<3x128xf32, #tpu.memory_space<vmem>>, vector<3x128xf32>
    tpu.vector_store %arg8[%c0_16, %c0_17], %29 {strides = array<i32>} : memref<3x128xf32, #tpu.memory_space<vmem>>, vector<3x128xf32>,
    return
  }
  func.func @transform_0(%arg0: i32) -> (i32, i32) {
    %c0_i32 = arith.constant 0 : i32
    %c0_i32_0 = arith.constant 0 : i32
    return %c0_i32, %arg0 : i32, i32
  }
  func.func @transform_1(%arg0: i32) -> (i32, i32) {
    %c0_i32 = arith.constant 0 : i32
    %c0_i32_0 = arith.constant 0 : i32
    %c0_i32_1 = arith.constant 0 : i32
    return %c0_i32, %c0_i32_0 : i32, i32
  }
  func.func @transform_2(%arg0: i32) -> (i32, i32) {
    %c0_i32 = arith.constant 0 : i32
    %c0_i32_0 = arith.constant 0 : i32
    %c0_i32_1 = arith.constant 0 : i32
    return %c0_i32, %c0_i32_0 : i32, i32
  }
  func.func @transform_3(%arg0: i32) -> (i32, i32) {
    %c0_i32 = arith.constant 0 : i32
    %c0_i32_0 = arith.constant 0 : i32
    %c0_i32_1 = arith.constant 0 : i32
    return %c0_i32, %c0_i32_0 : i32, i32
  }
  func.func @transform_4(%arg0: i32) -> (i32, i32) {
    %c0_i32 = arith.constant 0 : i32
    %c0_i32_0 = arith.constant 0 : i32
    %c0_i32_1 = arith.constant 0 : i32
    return %c0_i32, %c0_i32_0 : i32, i32
  }
  func.func @transform_5(%arg0: i32) -> (i32, i32) {
    %c0_i32 = arith.constant 0 : i32
    %c0_i32_0 = arith.constant 0 : i32
    %c0_i32_1 = arith.constant 0 : i32
    return %c0_i32, %c0_i32_0 : i32, i32
  }
  func.func @transform_6(%arg0: i32) -> (i32, i32) {
    %c0_i32 = arith.constant 0 : i32
    %c0_i32_0 = arith.constant 0 : i32
    %c0_i32_1 = arith.constant 0 : i32
    return %c0_i32, %c0_i32_0 : i32, i32
  }
  func.func @transform_7(%arg0: i32) -> (i32, i32) {
    %c0_i32 = arith.constant 0 : i32
    %c0_i32_0 = arith.constant 0 : i32
    return %c0_i32, %arg0 : i32, i32
  }
}

</mosaic_0001>

<llo_original>
// kernel: tpu_custom_call.1
$region0: #{tpu_custom_call.1}
  #allocation0 [shape = 'u32[]', space=smem, size = 0x4, offset = 0x4, fixed_abs, tag = 'smem constant byte address 0x4 - core index']
  #allocation1 [shape = 'u32[144,128]{1,0:T(1,128)}', space=vmem, size = 0x12000, scoped, tag = 'internal scratch']
  %s0 = inlined_call_operand.vmem [shape: f32[2,128], index: 0, kind: input, shape index: {}]
  %s1 = inlined_call_operand.vmem [shape: f32[64,2], index: 1, kind: input, shape index: {}]
  %s2 = inlined_call_operand.vmem [shape: f32[64,1], index: 2, kind: input, shape index: {}]
  %s3 = inlined_call_operand.vmem [shape: f32[64,64], index: 3, kind: input, shape index: {}]
  %s4 = inlined_call_operand.vmem [shape: f32[64,1], index: 4, kind: input, shape index: {}]
  %s5 = inlined_call_operand.vmem [shape: f32[3,64], index: 5, kind: input, shape index: {}]
  %s6 = inlined_call_operand.vmem [shape: f32[3,1], index: 6, kind: input, shape index: {}]
  %s7 = inlined_call_operand.hbm [shape: f32[3,128], index: 7, kind: output, shape index: {}]
  %s8 = sld [smem:[#allocation0]]
  $region38: #{tpu_custom_call.1} parent=0
    _
  %s10 = ssub.s32 1, %s8
  %s11 = scalar_select 0, %s10, %s8
  $region1: #{tpu_custom_call.1} parent=0
    #allocation2 [shape = 'u8[2048]{0}', space=vmem, size = 0x800, scoped, tag = 'output window, operand 0, single buffered']
    #allocation3 [shape = 's32[1]{0}', space=sflag, size = 0x4, scoped, tag = 'scoped memory for tpu_custom_call.1']
    %12 = vsyncpa [#allocation3], 0
    // Predicated region
    $region2: #{tpu_custom_call.1} parent=1 // pred_check
      _
    $region3: #{tpu_custom_call.1} parent=1 // pred_check_branch
      %14 = sbr.rel (0) target = $region5
    $region4: #{tpu_custom_call.1} parent=1 // pred_region
      _
    $region5: #{tpu_custom_call.1} parent=1 // pred_fallthru
      _
    // Predicated region
    $region6: #{tpu_custom_call.1} parent=1 // pred_check
      _
    $region7: #{tpu_custom_call.1} parent=1 // pred_check_branch
      %16 = sbr.rel (0) target = $region9
    $region8: #{tpu_custom_call.1} parent=1 // pred_region
      _
    $region9: #{tpu_custom_call.1} parent=1 // pred_fallthru
      _
    // Predicated region
    $region10: #{tpu_custom_call.1} parent=1 // pred_check
      _
    $region11: #{tpu_custom_call.1} parent=1 // pred_check_branch
      %18 = sbr.rel (0) target = $region13
    $region12: #{tpu_custom_call.1} parent=1 // pred_region
      _
    $region13: #{tpu_custom_call.1} parent=1 // pred_fallthru
      _
    // Predicated region
    $region14: #{tpu_custom_call.1} parent=1 // pred_check
      _
    $region15: #{tpu_custom_call.1} parent=1 // pred_check_branch
      %20 = sbr.rel (0) target = $region17
    $region16: #{tpu_custom_call.1} parent=1 // pred_region
      _
    $region17: #{tpu_custom_call.1} parent=1 // pred_fallthru
      _
    // Predicated region
    $region18: #{tpu_custom_call.1} parent=1 // pred_check
      _
    $region19: #{tpu_custom_call.1} parent=1 // pred_check_branch
      %22 = sbr.rel (0) target = $region21
    $region20: #{tpu_custom_call.1} parent=1 // pred_region
      _
    $region21: #{tpu_custom_call.1} parent=1 // pred_fallthru
      _
    // Predicated region
    $region22: #{tpu_custom_call.1} parent=1 // pred_check
      _
    $region23: #{tpu_custom_call.1} parent=1 // pred_check_branch
      %24 = sbr.rel (0) target = $region25
    $region24: #{tpu_custom_call.1} parent=1 // pred_region
      _
    $region25: #{tpu_custom_call.1} parent=1 // pred_fallthru
      _
    // Predicated region
    $region26: #{tpu_custom_call.1} parent=1 // pred_check
      _
    $region27: #{tpu_custom_call.1} parent=1 // pred_check_branch
      %26 = sbr.rel (0) target = $region29
    $region28: #{tpu_custom_call.1} parent=1 // pred_region
      _
    $region29: #{tpu_custom_call.1} parent=1 // pred_fallthru
      _
    %v27 = vld [vmem:[%s0] sm:$0x3]
    %v28 = vld [vmem:[%s1] sm:$0xff]
    %v29 = vld [vmem:[%s1 + $0x8] sm:$0xff]
    %v30 = vld [vmem:[%s1 + $0x10] sm:$0xff]
    %v31 = vld [vmem:[%s1 + $0x18] sm:$0xff]
    %v32 = vld [vmem:[%s1 + $0x20] sm:$0xff]
    %v33 = vld [vmem:[%s1 + $0x28] sm:$0xff]
    %v34 = vld [vmem:[%s1 + $0x30] sm:$0xff]
    %v35 = vld [vmem:[%s1 + $0x38] sm:$0xff]
    %v36 = vld [vmem:[%s2] sm:$0xff]
    %v37 = vld [vmem:[%s2 + $0x8] sm:$0xff]
    %v38 = vld [vmem:[%s2 + $0x10] sm:$0xff]
    %v39 = vld [vmem:[%s2 + $0x18] sm:$0xff]
    %v40 = vld [vmem:[%s2 + $0x20] sm:$0xff]
    %v41 = vld [vmem:[%s2 + $0x28] sm:$0xff]
    %v42 = vld [vmem:[%s2 + $0x30] sm:$0xff]
    %v43 = vld [vmem:[%s2 + $0x38] sm:$0xff]
    %45 = vset.pattern.permute.xlu0 0
    %46 = vperm.xlu0 %45, %v28
    %v47 = vpop.permute.xlu0 %46
    %50 = vset.pattern.permute.xlu0 0
    %51 = vperm.xlu0 %50, %v29
    %v52 = vpop.permute.xlu0 %51
    %55 = vset.pattern.permute.xlu0 0
    %56 = vperm.xlu0 %55, %v30
    %v57 = vpop.permute.xlu0 %56
    %60 = vset.pattern.permute.xlu0 0
    %61 = vperm.xlu0 %60, %v31
    %v62 = vpop.permute.xlu0 %61
    %65 = vset.pattern.permute.xlu0 0
    %66 = vperm.xlu0 %65, %v32
    %v67 = vpop.permute.xlu0 %66
    %70 = vset.pattern.permute.xlu0 0
    %71 = vperm.xlu0 %70, %v33
    %v72 = vpop.permute.xlu0 %71
    %75 = vset.pattern.permute.xlu0 0
    %76 = vperm.xlu0 %75, %v34
    %v77 = vpop.permute.xlu0 %76
    %80 = vset.pattern.permute.xlu0 0
    %81 = vperm.xlu0 %80, %v35
    %v82 = vpop.permute.xlu0 %81
    %v84 = vlaneseq
    %v85 = vshrl.u32 %v84, 7
    %v86 = vsub.s32 0, %v85
    %v87 = vrot.slane %v27, %v86
    %v88 = vmul.f32 %v47, %v87
    %v89 = vmul.f32 %v52, %v87
    %v90 = vmul.f32 %v57, %v87
    %v91 = vmul.f32 %v62, %v87
    %v92 = vmul.f32 %v67, %v87
    %v93 = vmul.f32 %v72, %v87
    %v94 = vmul.f32 %v77, %v87
    %v95 = vmul.f32 %v82, %v87
    %97 = vset.pattern.permute.xlu0 0
    %98 = vperm.xlu0 %97, %v36
    %v99 = vpop.permute.xlu0 %98
    %102 = vset.pattern.permute.xlu0 0
    %103 = vperm.xlu0 %102, %v37
    %v104 = vpop.permute.xlu0 %103
    %107 = vset.pattern.permute.xlu0 0
    %108 = vperm.xlu0 %107, %v38
    %v109 = vpop.permute.xlu0 %108
    %112 = vset.pattern.permute.xlu0 0
    %113 = vperm.xlu0 %112, %v39
    %v114 = vpop.permute.xlu0 %113
    %117 = vset.pattern.permute.xlu0 0
    %118 = vperm.xlu0 %117, %v40
    %v119 = vpop.permute.xlu0 %118
    %122 = vset.pattern.permute.xlu0 0
    %123 = vperm.xlu0 %122, %v41
    %v124 = vpop.permute.xlu0 %123
    %127 = vset.pattern.permute.xlu0 0
    %128 = vperm.xlu0 %127, %v42
    %v129 = vpop.permute.xlu0 %128
    %132 = vset.pattern.permute.xlu0 0
    %133 = vperm.xlu0 %132, %v43
    %v134 = vpop.permute.xlu0 %133
    %v136 = vadd.f32 %v99, %v88
    %v137 = vadd.f32 %v104, %v89
    %v138 = vadd.f32 %v109, %v90
    %v139 = vadd.f32 %v114, %v91
    %v140 = vadd.f32 %v119, %v92
    %v141 = vadd.f32 %v124, %v93
    %v142 = vadd.f32 %v129, %v94
    %v143 = vadd.f32 %v134, %v95
    %144 = vset.pattern.permute.xlu0 1
    %145 = vperm.xlu0 %144, %v28
    %v146 = vpop.permute.xlu0 %145
    %148 = vset.pattern.permute.xlu0 1
    %149 = vperm.xlu0 %148, %v29
    %v150 = vpop.permute.xlu0 %149
    %152 = vset.pattern.permute.xlu0 1
    %153 = vperm.xlu0 %152, %v30
    %v154 = vpop.permute.xlu0 %153
    %156 = vset.pattern.permute.xlu0 1
    %157 = vperm.xlu0 %156, %v31
    %v158 = vpop.permute.xlu0 %157
    %160 = vset.pattern.permute.xlu0 1
    %161 = vperm.xlu0 %160, %v32
    %v162 = vpop.permute.xlu0 %161
    %164 = vset.pattern.permute.xlu0 1
    %165 = vperm.xlu0 %164, %v33
    %v166 = vpop.permute.xlu0 %165
    %168 = vset.pattern.permute.xlu0 1
    %169 = vperm.xlu0 %168, %v34
    %v170 = vpop.permute.xlu0 %169
    %172 = vset.pattern.permute.xlu0 1
    %173 = vperm.xlu0 %172, %v35
    %v174 = vpop.permute.xlu0 %173
    %v176 = vlaneseq
    %v177 = vshrl.u32 %v176, 7
    %v178 = vsub.s32 1, %v177
    %v179 = vrot.slane %v27, %v178
    %v180 = vmul.f32 %v146, %v179
    %v181 = vmul.f32 %v150, %v179
    %v182 = vmul.f32 %v154, %v179
    %v183 = vmul.f32 %v158, %v179
    %v184 = vmul.f32 %v162, %v179
    %v185 = vmul.f32 %v166, %v179
    %v186 = vmul.f32 %v170, %v179
    %v187 = vmul.f32 %v174, %v179
    %v188 = vadd.f32 %v136, %v180
    %v189 = vadd.f32 %v137, %v181
    %v190 = vadd.f32 %v138, %v182
    %v191 = vadd.f32 %v139, %v183
    %v192 = vadd.f32 %v140, %v184
    %v193 = vadd.f32 %v141, %v185
    %v194 = vadd.f32 %v142, %v186
    %v195 = vadd.f32 %v143, %v187
    %v196 = vmax.f32 %v188, 0.0
    %v197 = vmax.f32 %v189, 0.0
    %v198 = vmax.f32 %v190, 0.0
    %v199 = vmax.f32 %v191, 0.0
    %v200 = vmax.f32 %v192, 0.0
    %v201 = vmax.f32 %v193, 0.0
    %v202 = vmax.f32 %v194, 0.0
    %v203 = vmax.f32 %v195, 0.0
    %v204 = vld [vmem:[%s3] sm:$0xff]
    %v205 = vld [vmem:[%s3 + $0x8] sm:$0xff]
    %v206 = vld [vmem:[%s3 + $0x10] sm:$0xff]
    %v207 = vld [vmem:[%s3 + $0x18] sm:$0xff]
    %v208 = vld [vmem:[%s3 + $0x20] sm:$0xff]
    %v209 = vld [vmem:[%s3 + $0x28] sm:$0xff]
    %v210 = vld [vmem:[%s3 + $0x30] sm:$0xff]
    %v211 = vld [vmem:[%s3 + $0x38] sm:$0xff]
    %v212 = vld [vmem:[%s4] sm:$0xff]
    %v213 = vld [vmem:[%s4 + $0x8] sm:$0xff]
    %v214 = vld [vmem:[%s4 + $0x10] sm:$0xff]
    %v215 = vld [vmem:[%s4 + $0x18] sm:$0xff]
    %v216 = vld [vmem:[%s4 + $0x20] sm:$0xff]
    %v217 = vld [vmem:[%s4 + $0x28] sm:$0xff]
    %v218 = vld [vmem:[%s4 + $0x30] sm:$0xff]
    %v219 = vld [vmem:[%s4 + $0x38] sm:$0xff]
    %221 = vset.pattern.permute.xlu0 0
    %222 = vperm.xlu0 %221, %v212
    %v223 = vpop.permute.xlu0 %222
    %226 = vset.pattern.permute.xlu0 0
    %227 = vperm.xlu0 %226, %v213
    %v228 = vpop.permute.xlu0 %227
    %231 = vset.pattern.permute.xlu0 0
    %232 = vperm.xlu0 %231, %v214
    %v233 = vpop.permute.xlu0 %232
    %236 = vset.pattern.permute.xlu0 0
    %237 = vperm.xlu0 %236, %v215
    %v238 = vpop.permute.xlu0 %237
    %241 = vset.pattern.permute.xlu0 0
    %242 = vperm.xlu0 %241, %v216
    %v243 = vpop.permute.xlu0 %242
    %246 = vset.pattern.permute.xlu0 0
    %247 = vperm.xlu0 %246, %v217
    %v248 = vpop.permute.xlu0 %247
    %251 = vset.pattern.permute.xlu0 0
    %252 = vperm.xlu0 %251, %v218
    %v253 = vpop.permute.xlu0 %252
    %256 = vset.pattern.permute.xlu0 0
    %257 = vperm.xlu0 %256, %v219
    %v258 = vpop.permute.xlu0 %257
    %vm260 = vcmask 523264
    %v262 = vsel %vm260, %v204, 0
    %v265 = vsel %vm260, %v205, 0
    %v268 = vsel %vm260, %v206, 0
    %v271 = vsel %vm260, %v207, 0
    %v274 = vsel %vm260, %v208, 0
    %v277 = vsel %vm260, %v209, 0
    %v280 = vsel %vm260, %v210, 0
    %v283 = vsel %vm260, %v211, 0
    %285 = vmatprep.subr.mxu0 0.0
    %286 = vmatpush1.msra.mxu0 %v196
    %287 = vmatprep.subr.mxu0 0.0
    %288 = vmatpush1.msra.mxu0 %v197
    %289 = vmatprep.subr.mxu0 0.0
    %290 = vmatpush1.msra.mxu0 %v198
    %291 = vmatprep.subr.mxu0 0.0
    %292 = vmatpush1.msra.mxu0 %v199
    %293 = vmatprep.subr.mxu0 0.0
    %294 = vmatpush1.msra.mxu0 %v200
    %295 = vmatprep.subr.mxu0 0.0
    %296 = vmatpush1.msra.mxu0 %v201
    %297 = vmatprep.subr.mxu0 0.0
    %298 = vmatpush1.msra.mxu0 %v202
    %299 = vmatprep.subr.mxu0 0.0
    %300 = vmatpush1.msra.mxu0 %v203
    %301 = vmatprep.subr.mxu0 0.0
    %302 = vmatpush1.msra.mxu0 0.0
    %303 = vmatprep.subr.mxu0 0.0
    %304 = vmatpush1.msra.mxu0 0.0
    %305 = vmatprep.subr.mxu0 0.0
    %306 = vmatpush1.msra.mxu0 0.0
    %307 = vmatprep.subr.mxu0 0.0
    %308 = vmatpush1.msra.mxu0 0.0
    %309 = vmatprep.subr.mxu0 0.0
    %310 = vmatpush1.msra.mxu0 0.0
    %311 = vmatprep.subr.mxu0 0.0
    %312 = vmatpush1.msra.mxu0 0.0
    %313 = vmatprep.subr.mxu0 0.0
    %314 = vmatpush1.msra.mxu0 0.0
    %315 = vmatprep.subr.mxu0 0.0
    %316 = vmatpush1.msra.mxu0 0.0
    %317 = vmatprep.subr.mxu0 0.0
    %318 = vmatpush1.msra.mxu0 0.0
    %319 = vmatprep.subr.mxu0 0.0
    %320 = vmatpush1.msra.mxu0 0.0
    %321 = vmatprep.subr.mxu0 0.0
    %322 = vmatpush1.msra.mxu0 0.0
    %323 = vmatprep.subr.mxu0 0.0
    %324 = vmatpush1.msra.mxu0 0.0
    %325 = vmatprep.subr.mxu0 0.0
    %326 = vmatpush1.msra.mxu0 0.0
    %327 = vmatprep.subr.mxu0 0.0
    %328 = vmatpush1.msra.mxu0 0.0
    %329 = vmatprep.subr.mxu0 0.0
    %330 = vmatpush1.msra.mxu0 0.0
    %331 = vmatprep.subr.mxu0 0.0
    %332 = vmatpush1.msra.mxu0 0.0
    %333 = vmatprep.subr.mxu0 0.0
    %334 = vmatpush1.msra.mxu0 0.0
    %335 = vmatprep.subr.mxu0 0.0
    %336 = vmatpush1.msra.mxu0 0.0
    %337 = vmatprep.subr.mxu0 0.0
    %338 = vmatpush1.msra.mxu0 0.0
    %339 = vmatprep.subr.mxu0 0.0
    %340 = vmatpush1.msra.mxu0 0.0
    %341 = vmatprep.subr.mxu0 0.0
    %342 = vmatpush1.msra.mxu0 0.0
    %343 = vmatprep.subr.mxu0 0.0
    %344 = vmatpush1.msra.mxu0 0.0
    %345 = vmatprep.subr.mxu0 0.0
    %346 = vmatpush1.msra.mxu0 0.0
    %347 = vmatprep.subr.mxu0 0.0
    %348 = vmatpush1.msra.mxu0 0.0
    %349 = vmatprep.mubr.f32.mxu0 0.0
    %350 = vmatmul.mubr.f32.gmra.mrb[0].mxu0 %v262
    %v351 = vpop.f32.mrb[0].mxu0
    %v352 = vadd.f32 %v223, %v351
    %v353 = vpop.f32.mrb[0].mxu0
    %354 = vmatprep.mubr.f32.mxu0 0.0
    %355 = vmatmul.mubr.f32.gmra.mrb[0].mxu0 %v265
    %v356 = vpop.f32.mrb[0].mxu0
    %v357 = vadd.f32 %v228, %v356
    %v358 = vpop.f32.mrb[0].mxu0
    %359 = vmatprep.mubr.f32.mxu0 0.0
    %360 = vmatmul.mubr.f32.gmra.mrb[0].mxu0 %v268
    %v361 = vpop.f32.mrb[0].mxu0
    %v362 = vadd.f32 %v233, %v361
    %v363 = vpop.f32.mrb[0].mxu0
    %364 = vmatprep.mubr.f32.mxu0 0.0
    %365 = vmatmul.mubr.f32.gmra.mrb[0].mxu0 %v271
    %v366 = vpop.f32.mrb[0].mxu0
    %v367 = vadd.f32 %v238, %v366
    %v368 = vpop.f32.mrb[0].mxu0
    %369 = vmatprep.mubr.f32.mxu0 0.0
    %370 = vmatmul.mubr.f32.gmra.mrb[0].mxu0 %v274
    %v371 = vpop.f32.mrb[0].mxu0
    %v372 = vadd.f32 %v243, %v371
    %v373 = vpop.f32.mrb[0].mxu0
    %374 = vmatprep.mubr.f32.mxu0 0.0
    %375 = vmatmul.mubr.f32.gmra.mrb[0].mxu0 %v277
    %v376 = vpop.f32.mrb[0].mxu0
    %v377 = vadd.f32 %v248, %v376
    %v378 = vpop.f32.mrb[0].mxu0
    %379 = vmatprep.mubr.f32.mxu0 0.0
    %380 = vmatmul.mubr.f32.gmra.mrb[0].mxu0 %v280
    %v381 = vpop.f32.mrb[0].mxu0
    %v382 = vadd.f32 %v253, %v381
    %v383 = vpop.f32.mrb[0].mxu0
    %384 = vmatprep.mubr.f32.mxu0 0.0
    %385 = vmatmul.mubr.f32.gmra.mrb[0].mxu0 %v283
    %v386 = vpop.f32.mrb[0].mxu0
    %v387 = vadd.f32 %v258, %v386
    %v388 = vpop.f32.mrb[0].mxu0
    %389 = vdwg.mxu0
    %v390 = vmax.f32 %v352, 0.0
    %v391 = vmax.f32 %v357, 0.0
    %v392 = vmax.f32 %v362, 0.0
    %v393 = vmax.f32 %v367, 0.0
    %v394 = vmax.f32 %v372, 0.0
    %v395 = vmax.f32 %v377, 0.0
    %v396 = vmax.f32 %v382, 0.0
    %v397 = vmax.f32 %v387, 0.0
    %v398 = vld [vmem:[%s5] sm:$0x7]
    %v399 = vld [vmem:[%s6] sm:$0x7]
    %401 = vset.pattern.permute.xlu0 0
    %402 = vperm.xlu0 %401, %v399
    %v403 = vpop.permute.xlu0 %402
    %v406 = vsel %vm260, %v398, 0
    %408 = vmatprep.subr.mxu0 0.0
    %409 = vmatpush1.msra.mxu0 %v390
    %410 = vmatprep.subr.mxu0 0.0
    %411 = vmatpush1.msra.mxu0 %v391
    %412 = vmatprep.subr.mxu0 0.0
    %413 = vmatpush1.msra.mxu0 %v392
    %414 = vmatprep.subr.mxu0 0.0
    %415 = vmatpush1.msra.mxu0 %v393
    %416 = vmatprep.subr.mxu0 0.0
    %417 = vmatpush1.msra.mxu0 %v394
    %418 = vmatprep.subr.mxu0 0.0
    %419 = vmatpush1.msra.mxu0 %v395
    %420 = vmatprep.subr.mxu0 0.0
    %421 = vmatpush1.msra.mxu0 %v396
    %422 = vmatprep.subr.mxu0 0.0
    %423 = vmatpush1.msra.mxu0 %v397
    %424 = vmatprep.subr.mxu0 0.0
    %425 = vmatpush1.msra.mxu0 0.0
    %426 = vmatprep.subr.mxu0 0.0
    %427 = vmatpush1.msra.mxu0 0.0
    %428 = vmatprep.subr.mxu0 0.0
    %429 = vmatpush1.msra.mxu0 0.0
    %430 = vmatprep.subr.mxu0 0.0
    %431 = vmatpush1.msra.mxu0 0.0
    %432 = vmatprep.subr.mxu0 0.0
    %433 = vmatpush1.msra.mxu0 0.0
    %434 = vmatprep.subr.mxu0 0.0
    %435 = vmatpush1.msra.mxu0 0.0
    %436 = vmatprep.subr.mxu0 0.0
    %437 = vmatpush1.msra.mxu0 0.0
    %438 = vmatprep.subr.mxu0 0.0
    %439 = vmatpush1.msra.mxu0 0.0
    %440 = vmatprep.subr.mxu0 0.0
    %441 = vmatpush1.msra.mxu0 0.0
    %442 = vmatprep.subr.mxu0 0.0
    %443 = vmatpush1.msra.mxu0 0.0
    %444 = vmatprep.subr.mxu0 0.0
    %445 = vmatpush1.msra.mxu0 0.0
    %446 = vmatprep.subr.mxu0 0.0
    %447 = vmatpush1.msra.mxu0 0.0
    %448 = vmatprep.subr.mxu0 0.0
    %449 = vmatpush1.msra.mxu0 0.0
    %450 = vmatprep.subr.mxu0 0.0
    %451 = vmatpush1.msra.mxu0 0.0
    %452 = vmatprep.subr.mxu0 0.0
    %453 = vmatpush1.msra.mxu0 0.0
    %454 = vmatprep.subr.mxu0 0.0
    %455 = vmatpush1.msra.mxu0 0.0
    %456 = vmatprep.subr.mxu0 0.0
    %457 = vmatpush1.msra.mxu0 0.0
    %458 = vmatprep.subr.mxu0 0.0
    %459 = vmatpush1.msra.mxu0 0.0
    %460 = vmatprep.subr.mxu0 0.0
    %461 = vmatpush1.msra.mxu0 0.0
    %462 = vmatprep.subr.mxu0 0.0
    %463 = vmatpush1.msra.mxu0 0.0
    %464 = vmatprep.subr.mxu0 0.0
    %465 = vmatpush1.msra.mxu0 0.0
    %466 = vmatprep.subr.mxu0 0.0
    %467 = vmatpush1.msra.mxu0 0.0
    %468 = vmatprep.subr.mxu0 0.0
    %469 = vmatpush1.msra.mxu0 0.0
    %470 = vmatprep.subr.mxu0 0.0
    %471 = vmatpush1.msra.mxu0 0.0
    %472 = vmatprep.mubr.f32.mxu0 0.0
    %473 = vmatmul.mubr.f32.gmra.mrb[0].mxu0 %v406
    %v474 = vpop.f32.mrb[0].mxu0
    %v475 = vadd.f32 %v403, %v474
    %v476 = vpop.f32.mrb[0].mxu0
    %477 = vdwg.mxu0
    %478 = vst [vmem:[#allocation2] sm:$0x7] %v475
    // Predicated region
    $region30: #{tpu_custom_call.1} parent=1 // pred_check
      _
    $region31: #{tpu_custom_call.1} parent=1 // pred_check_branch
      %480 = sbr.rel (0) target = $region33
    $region32: #{tpu_custom_call.1} parent=1 // pred_region
      %s482 = ssub.s32 64, 64
      %483 = vsyncadd [#allocation3], %s482
      %s485 = sshll.u32 [#allocation2], 4
      %s486 = int_to_ptr.vmem [resolvable:$true] %s485
      %488 = dma.vmem_to_hbm [thread:$0]  %s486, 64, %s7, [#allocation3]
    $region33: #{tpu_custom_call.1} parent=1 // pred_fallthru
      _
    // Predicated region
    $region34: #{tpu_custom_call.1} parent=1 // pred_check
      _
    $region35: #{tpu_custom_call.1} parent=1 // pred_check_branch
      %490 = sbr.rel (0) target = $region37
    $region36: #{tpu_custom_call.1} parent=1 // pred_region
      %491 = dma.done [#allocation3], 64
    $region37: #{tpu_custom_call.1} parent=1 // pred_fallthru
      _
    %492 = vsyncpa [#allocation3], 1

</llo_original>
